<compile_context>
chip_gen: v7x
topology: tpu7x:2x2x1
jax: 0.10.0
libtpu: 0.0.40
codegen_flags: <defaults>
</compile_context>

<pallas_src>
import jax
import jax.numpy as jnp
from jax import lax
from jax.experimental import pallas as pl
from jax.experimental.pallas import tpu as pltpu


def _pn_kernel(feat_ref, p_ref, n_ref, x2_ref, p2_ref, n2_ref, out_ref):
    x = feat_ref[...]                                  # (tb, D)
    xs = x * jnp.asarray(-2.0, x.dtype)                # fold -2 into the matmul LHS

    # cross terms on the MXU: -2 * x @ P.T / -2 * x @ N.T (contract feature dim)
    dn = (((1,), (1,)), ((), ()))
    xp = lax.dot_general(xs, p_ref[...], dn, preferred_element_type=jnp.float32)  # (tb, tm)
    xn = lax.dot_general(xs, n_ref[...], dn, preferred_element_type=jnp.float32)  # (tb, tm)

    x2 = x2_ref[...]                                   # (tb, 1)  float32
    p2 = p2_ref[...]                                   # (1, tm)  float32
    n2 = n2_ref[...]                                   # (1, tm)  float32

    pos_sq = jnp.maximum(x2 + p2 + xp, 0.0)
    neg_sq = jnp.maximum(x2 + n2 + xn, 0.0)

    pos_dist = jnp.sqrt(pos_sq)
    neg_dist = jnp.sqrt(neg_sq)

    # exp(-pos)/(exp(-pos)+exp(-neg)) == 1/(1+exp(pos-neg))
    out_ref[...] = pl.reciprocal(
        1.0 + jnp.exp(pos_dist - neg_dist), approx=True
    ).astype(out_ref.dtype)


def _round_up(a, b):
    return (a + b - 1) // b * b


def pn_augment(feat, P, N, *, tb=256, tm=512):
    """feat: (B, D), P: (M, D), N: (M, D) -> (B, M) float32.

    tb / tm are desired tile sizes; they are clamped / aligned to the inputs
    (tb -> multiple of 8, tm -> multiple of 128) and the inputs are zero-padded
    up to tile multiples, with the padding sliced off the result.
    """
    B, D = feat.shape
    M, Dp = P.shape
    assert Dp == D and N.shape == (M, D)

    tb_eff = min(tb, _round_up(B, 8))
    tm_eff = min(tm, _round_up(M, 128))
    Bp = _round_up(B, tb_eff)
    Mp = _round_up(M, tm_eff)

    if Bp != B:
        feat = jnp.pad(feat, ((0, Bp - B), (0, 0)))
    if Mp != M:
        P = jnp.pad(P, ((0, Mp - M), (0, 0)))
        N = jnp.pad(N, ((0, Mp - M), (0, 0)))

    f32 = jnp.float32
    # Hoisted squared norms (computed once, streamed as tiny side inputs).
    x2 = jnp.sum(jnp.square(feat.astype(f32)), axis=-1, keepdims=True)        # (Bp, 1)
    p2 = jnp.sum(jnp.square(P.astype(f32)), axis=-1, keepdims=True).T         # (1, Mp)
    n2 = jnp.sum(jnp.square(N.astype(f32)), axis=-1, keepdims=True).T         # (1, Mp)

    # Batch axis innermost: P/N (and p2/n2) block indices are constant over the
    # inner loop, so Pallas does not re-fetch them from HBM per batch tile.
    grid = (Mp // tm_eff, Bp // tb_eff)

    out = pl.pallas_call(
        _pn_kernel,
        out_shape=jax.ShapeDtypeStruct((Bp, Mp), jnp.float32),
        grid_spec=pltpu.PrefetchScalarGridSpec(
            num_scalar_prefetch=0,
            grid=grid,
            in_specs=[
                pl.BlockSpec((tb_eff, D), lambda j, i: (i, 0)),   # feat rows
                pl.BlockSpec((tm_eff, D), lambda j, i: (j, 0)),   # P rows
                pl.BlockSpec((tm_eff, D), lambda j, i: (j, 0)),   # N rows
                pl.BlockSpec((tb_eff, 1), lambda j, i: (i, 0)),   # ||feat||^2
                pl.BlockSpec((1, tm_eff), lambda j, i: (0, j)),   # ||P||^2
                pl.BlockSpec((1, tm_eff), lambda j, i: (0, j)),   # ||N||^2
            ],
            out_specs=pl.BlockSpec((tb_eff, tm_eff), lambda j, i: (i, j)),
        ),
        compiler_params=pltpu.CompilerParams(
            dimension_semantics=("parallel", "parallel"),
        ),
    )(feat, P, N, x2, p2, n2)

    return out[:B, :M]


def pn_augment_ref(feat, P, N):
    """Pure-JAX reference mirroring the PyTorch forward exactly."""
    def l2(x, y):
        return jnp.sqrt(jnp.sum(jnp.square(x[:, None, :] - y), axis=-1))
    pos = l2(feat, P)
    neg = l2(feat, N)
    return jnp.exp(-pos) / (jnp.exp(-pos) + jnp.exp(-neg))


if __name__ == "__main__":
    # Small, deterministic inputs. PNAugment has no parameters.
    B, M, D = 16, 256, 128
    key = jax.random.PRNGKey(0)
    kf, kp, kn = jax.random.split(key, 3)
    feat = jax.random.normal(kf, (B, D), dtype=jnp.float32)
    P = jax.random.normal(kp, (M, D), dtype=jnp.float32)
    N = jax.random.normal(kn, (M, D), dtype=jnp.float32)

    out = pn_augment(feat, P, N)
    out = jax.block_until_ready(out)

    ref = jax.block_until_ready(pn_augment_ref(feat, P, N))
    assert out.shape == (B, M)
    # Slight extra slack vs the reference: norm-expansion distance + approx vrcp.
    assert jnp.allclose(out, ref, rtol=2e-3, atol=2e-3), "mismatch vs reference"

    print("KERNEL_OK")
</pallas_src>

<mosaic_0001>
module attributes {stable_mosaic.version = 11 : i64} {
  func.func @_pn_kernel(%arg0: i32, %arg1: i32, %arg2: memref<16x128xf32, #tpu.memory_space<vmem>>, %arg3: memref<256x128xf32, #tpu.memory_space<vmem>>, %arg4: memref<256x128xf32, #tpu.memory_space<vmem>>, %arg5: memref<16x1xf32, #tpu.memory_space<vmem>>, %arg6: memref<1x256xf32, #tpu.memory_space<vmem>>, %arg7: memref<1x256xf32, #tpu.memory_space<vmem>>, %arg8: memref<16x256xf32, #tpu.memory_space<vmem>>) attributes {dimension_semantics = [#tpu.dimension_semantics<parallel>, #tpu.dimension_semantics<parallel>], iteration_bounds = array<i64: 1, 1>, scalar_prefetch = 0 : i64, scratch_operands = 0 : i64, tpu.core_type = #tpu.core_type<tc>, window_params = [{transform_indices = @transform_0, window_bounds = array<i64: 16, 128>}, {transform_indices = @transform_1, window_bounds = array<i64: 256, 128>}, {transform_indices = @transform_2, window_bounds = array<i64: 256, 128>}, {transform_indices = @transform_3, window_bounds = array<i64: 16, 1>}, {transform_indices = @transform_4, window_bounds = array<i64: 1, 256>}, {transform_indices = @transform_5, window_bounds = array<i64: 1, 256>}, {transform_indices = @transform_6, window_bounds = array<i64: 16, 256>}]} {
    %c0 = arith.constant 0 : index
    %c0_0 = arith.constant 0 : index
    %0 = vector.load %arg2[%c0, %c0_0] : memref<16x128xf32, #tpu.memory_space<vmem>>, vector<16x128xf32>
    %cst = arith.constant -2.000000e+00 : f32
    %1 = vector.broadcast %cst : f32 to vector<16x128xf32>
    %2 = arith.mulf %0, %1 : vector<16x128xf32>
    %c0_1 = arith.constant 0 : index
    %c0_2 = arith.constant 0 : index
    %3 = vector.load %arg3[%c0_1, %c0_2] : memref<256x128xf32, #tpu.memory_space<vmem>>, vector<256x128xf32>
    %cst_3 = arith.constant dense<0.000000e+00> : vector<16x256xf32>
    %4 = tpu.matmul %2, %3, %cst_3 {dimension_numbers = #tpu.dot_dimension_numbers<[1], [1], [0], [0], [0, 0, 1, 0], [], []>} : vector<16x128xf32>, vector<256x128xf32>, vector<16x256xf32> -> vector<16x256xf32>
    %c0_4 = arith.constant 0 : index
    %c0_5 = arith.constant 0 : index
    %5 = vector.load %arg4[%c0_4, %c0_5] : memref<256x128xf32, #tpu.memory_space<vmem>>, vector<256x128xf32>
    %cst_6 = arith.constant dense<0.000000e+00> : vector<16x256xf32>
    %6 = tpu.matmul %2, %5, %cst_6 {dimension_numbers = #tpu.dot_dimension_numbers<[1], [1], [0], [0], [0, 0, 1, 0], [], []>} : vector<16x128xf32>, vector<256x128xf32>, vector<16x256xf32> -> vector<16x256xf32>
    %c0_7 = arith.constant 0 : index
    %c0_8 = arith.constant 0 : index
    %7 = vector.load %arg5[%c0_7, %c0_8] : memref<16x1xf32, #tpu.memory_space<vmem>>, vector<16x1xf32>
    %c0_9 = arith.constant 0 : index
    %c0_10 = arith.constant 0 : index
    %8 = vector.load %arg6[%c0_9, %c0_10] : memref<1x256xf32, #tpu.memory_space<vmem>>, vector<1x256xf32>
    %c0_11 = arith.constant 0 : index
    %c0_12 = arith.constant 0 : index
    %9 = vector.load %arg7[%c0_11, %c0_12] : memref<1x256xf32, #tpu.memory_space<vmem>>, vector<1x256xf32>
    %10 = vector.broadcast %7 : vector<16x1xf32> to vector<16x256xf32>
    %11 = vector.broadcast %8 : vector<1x256xf32> to vector<16x256xf32>
    %12 = arith.addf %10, %11 : vector<16x256xf32>
    %13 = arith.addf %12, %4 : vector<16x256xf32>
    %cst_13 = arith.constant 0.000000e+00 : f32
    %14 = vector.broadcast %cst_13 : f32 to vector<16x256xf32>
    %15 = arith.maximumf %13, %14 : vector<16x256xf32>
    %16 = vector.broadcast %7 : vector<16x1xf32> to vector<16x256xf32>
    %17 = vector.broadcast %9 : vector<1x256xf32> to vector<16x256xf32>
    %18 = arith.addf %16, %17 : vector<16x256xf32>
    %19 = arith.addf %18, %6 : vector<16x256xf32>
    %cst_14 = arith.constant 0.000000e+00 : f32
    %20 = vector.broadcast %cst_14 : f32 to vector<16x256xf32>
    %21 = arith.maximumf %19, %20 : vector<16x256xf32>
    %22 = math.sqrt %15 : vector<16x256xf32>
    %23 = math.sqrt %21 : vector<16x256xf32>
    %24 = arith.subf %22, %23 : vector<16x256xf32>
    %25 = math.exp %24 : vector<16x256xf32>
    %cst_15 = arith.constant 1.000000e+00 : f32
    %26 = vector.broadcast %cst_15 : f32 to vector<16x256xf32>
    %27 = arith.addf %26, %25 : vector<16x256xf32>
    %28 = tpu.reciprocal %27 {approx = true} : vector<16x256xf32> -> vector<16x256xf32>
    %c0_16 = arith.constant 0 : index
    %c0_17 = arith.constant 0 : index
    %29 = vector.load %arg8[%c0_16, %c0_17] : memref<16x256xf32, #tpu.memory_space<vmem>>, vector<16x256xf32>
    tpu.vector_store %arg8[%c0_16, %c0_17], %28 {strides = array<i32>} : memref<16x256xf32, #tpu.memory_space<vmem>>, vector<16x256xf32>,
    return
  }
  func.func @transform_0(%arg0: i32, %arg1: i32) -> (i32, i32) {
    %c0_i32 = arith.constant 0 : i32
    %c0_i32_0 = arith.constant 0 : i32
    return %arg1, %c0_i32 : i32, i32
  }
  func.func @transform_1(%arg0: i32, %arg1: i32) -> (i32, i32) {
    %c0_i32 = arith.constant 0 : i32
    %c0_i32_0 = arith.constant 0 : i32
    return %arg0, %c0_i32 : i32, i32
  }
  func.func @transform_2(%arg0: i32, %arg1: i32) -> (i32, i32) {
    %c0_i32 = arith.constant 0 : i32
    %c0_i32_0 = arith.constant 0 : i32
    return %arg0, %c0_i32 : i32, i32
  }
  func.func @transform_3(%arg0: i32, %arg1: i32) -> (i32, i32) {
    %c0_i32 = arith.constant 0 : i32
    %c0_i32_0 = arith.constant 0 : i32
    return %arg1, %c0_i32 : i32, i32
  }
  func.func @transform_4(%arg0: i32, %arg1: i32) -> (i32, i32) {
    %c0_i32 = arith.constant 0 : i32
    %c0_i32_0 = arith.constant 0 : i32
    return %c0_i32, %arg0 : i32, i32
  }
  func.func @transform_5(%arg0: i32, %arg1: i32) -> (i32, i32) {
    %c0_i32 = arith.constant 0 : i32
    %c0_i32_0 = arith.constant 0 : i32
    return %c0_i32, %arg0 : i32, i32
  }
  func.func @transform_6(%arg0: i32, %arg1: i32) -> (i32, i32) {
    %c0_i32 = arith.constant 0 : i32
    return %arg1, %arg0 : i32, i32
  }
}

</mosaic_0001>

<llo_original>
// kernel: tpu_custom_call.1
$region0: #{tpu_custom_call.1}
  #allocation0 [shape = 'u32[]', space=smem, size = 0x4, offset = 0x4, fixed_abs, tag = 'smem constant byte address 0x4 - core index']
  #allocation1 [shape = 'u32[144,128]{1,0:T(1,128)}', space=vmem, size = 0x12000, scoped, tag = 'internal scratch']
  %s0 = inlined_call_operand.vmem [shape: f32[16,128], index: 0, kind: input, shape index: {}]
  %s1 = inlined_call_operand.hbm [shape: f32[256,128], index: 1, kind: input, shape index: {}]
  %s2 = inlined_call_operand.hbm [shape: f32[256,128], index: 2, kind: input, shape index: {}]
  %s3 = inlined_call_operand.vmem [shape: f32[16,1], index: 3, kind: input, shape index: {}]
  %s4 = inlined_call_operand.vmem [shape: f32[1,256], index: 4, kind: input, shape index: {}]
  %s5 = inlined_call_operand.vmem [shape: f32[1,256], index: 5, kind: input, shape index: {}]
  %s6 = inlined_call_operand.hbm [shape: f32[16,256], index: 6, kind: output, shape index: {}]
  %s7 = sld [smem:[#allocation0]]
  $region42: #{tpu_custom_call.1} parent=0
    _
  %s9 = ssub.s32 1, %s7
  %s10 = scalar_select 0, %s9, %s7
  $region1: #{tpu_custom_call.1} parent=0
    #allocation2 [shape = 'u8[131072]{0}', space=vmem, size = 0x20000, scoped, tag = 'input window, operand 1, single buffered']
    #allocation3 [shape = 's32[1]{0}', space=sflag, size = 0x4, scoped, tag = 'scoped memory for tpu_custom_call.1']
    #allocation4 [shape = 's32[1]{0}', space=sflag, size = 0x4, scoped, tag = 'scoped memory for tpu_custom_call.1']
    #allocation5 [shape = 'u8[131072]{0}', space=vmem, size = 0x20000, scoped, tag = 'input window, operand 2, single buffered']
    #allocation6 [shape = 's32[1]{0}', space=sflag, size = 0x4, scoped, tag = 'scoped memory for tpu_custom_call.1']
    #allocation7 [shape = 'u8[16384]{0}', space=vmem, size = 0x4000, scoped, tag = 'output window, operand 0, single buffered']
    %11 = vsyncpa [#allocation3], 0
    %12 = vsyncpa [#allocation6], 0
    %13 = vsyncpa [#allocation4], 0
    // Predicated region
    $region2: #{tpu_custom_call.1} parent=1 // pred_check
      _
    $region3: #{tpu_custom_call.1} parent=1 // pred_check_branch
      %15 = sbr.rel (0) target = $region5
    $region4: #{tpu_custom_call.1} parent=1 // pred_region
      _
    $region5: #{tpu_custom_call.1} parent=1 // pred_fallthru
      _
    // Predicated region
    $region6: #{tpu_custom_call.1} parent=1 // pred_check
      _
    $region7: #{tpu_custom_call.1} parent=1 // pred_check_branch
      %17 = sbr.rel (0) target = $region9
    $region8: #{tpu_custom_call.1} parent=1 // pred_region
      %s19 = ssub.s32 4096, 4096
      %20 = vsyncadd [#allocation3], %s19
      %s21 = sshll.u32 [#allocation2], 4
      %s22 = int_to_ptr.vmem [resolvable:$true] %s21
      %27 = dma.hbm_to_vmem [thread:$0]  %s1, 4096, %s22, [#allocation3], 128, 128, 8
    $region9: #{tpu_custom_call.1} parent=1 // pred_fallthru
      _
    // Predicated region
    $region10: #{tpu_custom_call.1} parent=1 // pred_check
      _
    $region11: #{tpu_custom_call.1} parent=1 // pred_check_branch
      %29 = sbr.rel (0) target = $region13
    $region12: #{tpu_custom_call.1} parent=1 // pred_region
      %s31 = ssub.s32 4096, 4096
      %32 = vsyncadd [#allocation6], %s31
      %s33 = sshll.u32 [#allocation5], 4
      %s34 = int_to_ptr.vmem [resolvable:$true] %s33
      %39 = dma.hbm_to_vmem [thread:$0]  %s2, 4096, %s34, [#allocation6], 128, 128, 8
    $region13: #{tpu_custom_call.1} parent=1 // pred_fallthru
      _
    // Predicated region
    $region14: #{tpu_custom_call.1} parent=1 // pred_check
      _
    $region15: #{tpu_custom_call.1} parent=1 // pred_check_branch
      %41 = sbr.rel (0) target = $region17
    $region16: #{tpu_custom_call.1} parent=1 // pred_region
      _
    $region17: #{tpu_custom_call.1} parent=1 // pred_fallthru
      _
    // Predicated region
    $region18: #{tpu_custom_call.1} parent=1 // pred_check
      _
    $region19: #{tpu_custom_call.1} parent=1 // pred_check_branch
      %43 = sbr.rel (0) target = $region21
    $region20: #{tpu_custom_call.1} parent=1 // pred_region
      _
    $region21: #{tpu_custom_call.1} parent=1 // pred_fallthru
      _
    // Predicated region
    $region22: #{tpu_custom_call.1} parent=1 // pred_check
      _
    $region23: #{tpu_custom_call.1} parent=1 // pred_check_branch
      %45 = sbr.rel (0) target = $region25
    $region24: #{tpu_custom_call.1} parent=1 // pred_region
      _
    $region25: #{tpu_custom_call.1} parent=1 // pred_fallthru
      _
    // Predicated region
    $region26: #{tpu_custom_call.1} parent=1 // pred_check
      _
    $region27: #{tpu_custom_call.1} parent=1 // pred_check_branch
      %47 = sbr.rel (0) target = $region29
    $region28: #{tpu_custom_call.1} parent=1 // pred_region
      %48 = dma.done [#allocation3], 4096
    $region29: #{tpu_custom_call.1} parent=1 // pred_fallthru
      _
    // Predicated region
    $region30: #{tpu_custom_call.1} parent=1 // pred_check
      _
    $region31: #{tpu_custom_call.1} parent=1 // pred_check_branch
      %50 = sbr.rel (0) target = $region33
    $region32: #{tpu_custom_call.1} parent=1 // pred_region
      %51 = dma.done [#allocation6], 4096
    $region33: #{tpu_custom_call.1} parent=1 // pred_fallthru
      _
    %v52 = vld [vmem:[%s0] sm:$0xff]
    %v53 = vld [vmem:[%s0 + $0x8] sm:$0xff]
    %v54 = vmul.f32 %v52, -2.0
    %v55 = vmul.f32 %v53, -2.0
    %v56 = vld [vmem:[#allocation2] sm:$0xff]
    %v57 = vld [vmem:[#allocation2 + $0x8] sm:$0xff]
    %v58 = vld [vmem:[#allocation2 + $0x10] sm:$0xff]
    %v59 = vld [vmem:[#allocation2 + $0x18] sm:$0xff]
    %v60 = vld [vmem:[#allocation2 + $0x20] sm:$0xff]
    %v61 = vld [vmem:[#allocation2 + $0x28] sm:$0xff]
    %v62 = vld [vmem:[#allocation2 + $0x30] sm:$0xff]
    %v63 = vld [vmem:[#allocation2 + $0x38] sm:$0xff]
    %v64 = vld [vmem:[#allocation2 + $0x40] sm:$0xff]
    %v65 = vld [vmem:[#allocation2 + $0x48] sm:$0xff]
    %v66 = vld [vmem:[#allocation2 + $0x50] sm:$0xff]
    %v67 = vld [vmem:[#allocation2 + $0x58] sm:$0xff]
    %v68 = vld [vmem:[#allocation2 + $0x60] sm:$0xff]
    %v69 = vld [vmem:[#allocation2 + $0x68] sm:$0xff]
    %v70 = vld [vmem:[#allocation2 + $0x70] sm:$0xff]
    %v71 = vld [vmem:[#allocation2 + $0x78] sm:$0xff]
    %v72 = vld [vmem:[#allocation2 + $0x80] sm:$0xff]
    %v73 = vld [vmem:[#allocation2 + $0x88] sm:$0xff]
    %v74 = vld [vmem:[#allocation2 + $0x90] sm:$0xff]
    %v75 = vld [vmem:[#allocation2 + $0x98] sm:$0xff]
    %v76 = vld [vmem:[#allocation2 + $0xa0] sm:$0xff]
    %v77 = vld [vmem:[#allocation2 + $0xa8] sm:$0xff]
    %v78 = vld [vmem:[#allocation2 + $0xb0] sm:$0xff]
    %v79 = vld [vmem:[#allocation2 + $0xb8] sm:$0xff]
    %v80 = vld [vmem:[#allocation2 + $0xc0] sm:$0xff]
    %v81 = vld [vmem:[#allocation2 + $0xc8] sm:$0xff]
    %v82 = vld [vmem:[#allocation2 + $0xd0] sm:$0xff]
    %v83 = vld [vmem:[#allocation2 + $0xd8] sm:$0xff]
    %v84 = vld [vmem:[#allocation2 + $0xe0] sm:$0xff]
    %v85 = vld [vmem:[#allocation2 + $0xe8] sm:$0xff]
    %v86 = vld [vmem:[#allocation2 + $0xf0] sm:$0xff]
    %v87 = vld [vmem:[#allocation2 + $0xf8] sm:$0xff]
    %88 = vmatprep.subr.mxu0 0.0
    %89 = vmatpush1.xpose.msra.mxu0 %v56
    %90 = vmatprep.subr.mxu0 0.0
    %91 = vmatpush1.xpose.msra.mxu0 %v57
    %92 = vmatprep.subr.mxu0 0.0
    %93 = vmatpush1.xpose.msra.mxu0 %v58
    %94 = vmatprep.subr.mxu0 0.0
    %95 = vmatpush1.xpose.msra.mxu0 %v59
    %96 = vmatprep.subr.mxu0 0.0
    %97 = vmatpush1.xpose.msra.mxu0 %v60
    %98 = vmatprep.subr.mxu0 0.0
    %99 = vmatpush1.xpose.msra.mxu0 %v61
    %100 = vmatprep.subr.mxu0 0.0
    %101 = vmatpush1.xpose.msra.mxu0 %v62
    %102 = vmatprep.subr.mxu0 0.0
    %103 = vmatpush1.xpose.msra.mxu0 %v63
    %104 = vmatprep.subr.mxu0 0.0
    %105 = vmatpush1.xpose.msra.mxu0 %v64
    %106 = vmatprep.subr.mxu0 0.0
    %107 = vmatpush1.xpose.msra.mxu0 %v65
    %108 = vmatprep.subr.mxu0 0.0
    %109 = vmatpush1.xpose.msra.mxu0 %v66
    %110 = vmatprep.subr.mxu0 0.0
    %111 = vmatpush1.xpose.msra.mxu0 %v67
    %112 = vmatprep.subr.mxu0 0.0
    %113 = vmatpush1.xpose.msra.mxu0 %v68
    %114 = vmatprep.subr.mxu0 0.0
    %115 = vmatpush1.xpose.msra.mxu0 %v69
    %116 = vmatprep.subr.mxu0 0.0
    %117 = vmatpush1.xpose.msra.mxu0 %v70
    %118 = vmatprep.subr.mxu0 0.0
    %119 = vmatpush1.xpose.msra.mxu0 %v71
    %120 = vmatprep.subr.mxu0 0.0
    %121 = vmatpush1.xpose.msra.mxu0 %v72
    %122 = vmatprep.subr.mxu0 0.0
    %123 = vmatpush1.xpose.msra.mxu0 %v73
    %124 = vmatprep.subr.mxu0 0.0
    %125 = vmatpush1.xpose.msra.mxu0 %v74
    %126 = vmatprep.subr.mxu0 0.0
    %127 = vmatpush1.xpose.msra.mxu0 %v75
    %128 = vmatprep.subr.mxu0 0.0
    %129 = vmatpush1.xpose.msra.mxu0 %v76
    %130 = vmatprep.subr.mxu0 0.0
    %131 = vmatpush1.xpose.msra.mxu0 %v77
    %132 = vmatprep.subr.mxu0 0.0
    %133 = vmatpush1.xpose.msra.mxu0 %v78
    %134 = vmatprep.subr.mxu0 0.0
    %135 = vmatpush1.xpose.msra.mxu0 %v79
    %136 = vmatprep.subr.mxu0 0.0
    %137 = vmatpush1.xpose.msra.mxu0 %v80
    %138 = vmatprep.subr.mxu0 0.0
    %139 = vmatpush1.xpose.msra.mxu0 %v81
    %140 = vmatprep.subr.mxu0 0.0
    %141 = vmatpush1.xpose.msra.mxu0 %v82
    %142 = vmatprep.subr.mxu0 0.0
    %143 = vmatpush1.xpose.msra.mxu0 %v83
    %144 = vmatprep.subr.mxu0 0.0
    %145 = vmatpush1.xpose.msra.mxu0 %v84
    %146 = vmatprep.subr.mxu0 0.0
    %147 = vmatpush1.xpose.msra.mxu0 %v85
    %148 = vmatprep.subr.mxu0 0.0
    %149 = vmatpush1.xpose.msra.mxu0 %v86
    %150 = vmatprep.subr.mxu0 0.0
    %151 = vmatpush1.xpose.msra.mxu0 %v87
    %152 = vmatprep.mubr.f32.mxu0 0.0
    %153 = vmatmul.mubr.f32.gmra.mrb[0].mxu0 %v54
    %v154 = vpop.f32.mrb[0].mxu0
    %v155 = vadd.f32 0.0, %v154
    %v156 = vpop.f32.mrb[0].mxu0
    %v157 = vadd.f32 0.0, %v156
    %158 = vmatprep.mubr.f32.mxu0 0.0
    %159 = vmatmul.mubr.f32.gmra.mrb[0].mxu0 %v55
    %v160 = vpop.f32.mrb[0].mxu0
    %v161 = vadd.f32 0.0, %v160
    %v162 = vpop.f32.mrb[0].mxu0
    %v163 = vadd.f32 0.0, %v162
    %164 = vdwg.mxu0
    %v165 = vld [vmem:[#allocation5] sm:$0xff]
    %v166 = vld [vmem:[#allocation5 + $0x8] sm:$0xff]
    %v167 = vld [vmem:[#allocation5 + $0x10] sm:$0xff]
    %v168 = vld [vmem:[#allocation5 + $0x18] sm:$0xff]
    %v169 = vld [vmem:[#allocation5 + $0x20] sm:$0xff]
    %v170 = vld [vmem:[#allocation5 + $0x28] sm:$0xff]
    %v171 = vld [vmem:[#allocation5 + $0x30] sm:$0xff]
    %v172 = vld [vmem:[#allocation5 + $0x38] sm:$0xff]
    %v173 = vld [vmem:[#allocation5 + $0x40] sm:$0xff]
    %v174 = vld [vmem:[#allocation5 + $0x48] sm:$0xff]
    %v175 = vld [vmem:[#allocation5 + $0x50] sm:$0xff]
    %v176 = vld [vmem:[#allocation5 + $0x58] sm:$0xff]
    %v177 = vld [vmem:[#allocation5 + $0x60] sm:$0xff]
    %v178 = vld [vmem:[#allocation5 + $0x68] sm:$0xff]
    %v179 = vld [vmem:[#allocation5 + $0x70] sm:$0xff]
    %v180 = vld [vmem:[#allocation5 + $0x78] sm:$0xff]
    %v181 = vld [vmem:[#allocation5 + $0x80] sm:$0xff]
    %v182 = vld [vmem:[#allocation5 + $0x88] sm:$0xff]
    %v183 = vld [vmem:[#allocation5 + $0x90] sm:$0xff]
    %v184 = vld [vmem:[#allocation5 + $0x98] sm:$0xff]
    %v185 = vld [vmem:[#allocation5 + $0xa0] sm:$0xff]
    %v186 = vld [vmem:[#allocation5 + $0xa8] sm:$0xff]
    %v187 = vld [vmem:[#allocation5 + $0xb0] sm:$0xff]
    %v188 = vld [vmem:[#allocation5 + $0xb8] sm:$0xff]
    %v189 = vld [vmem:[#allocation5 + $0xc0] sm:$0xff]
    %v190 = vld [vmem:[#allocation5 + $0xc8] sm:$0xff]
    %v191 = vld [vmem:[#allocation5 + $0xd0] sm:$0xff]
    %v192 = vld [vmem:[#allocation5 + $0xd8] sm:$0xff]
    %v193 = vld [vmem:[#allocation5 + $0xe0] sm:$0xff]
    %v194 = vld [vmem:[#allocation5 + $0xe8] sm:$0xff]
    %v195 = vld [vmem:[#allocation5 + $0xf0] sm:$0xff]
    %v196 = vld [vmem:[#allocation5 + $0xf8] sm:$0xff]
    %197 = vmatprep.subr.mxu0 0.0
    %198 = vmatpush1.xpose.msra.mxu0 %v165
    %199 = vmatprep.subr.mxu0 0.0
    %200 = vmatpush1.xpose.msra.mxu0 %v166
    %201 = vmatprep.subr.mxu0 0.0
    %202 = vmatpush1.xpose.msra.mxu0 %v167
    %203 = vmatprep.subr.mxu0 0.0
    %204 = vmatpush1.xpose.msra.mxu0 %v168
    %205 = vmatprep.subr.mxu0 0.0
    %206 = vmatpush1.xpose.msra.mxu0 %v169
    %207 = vmatprep.subr.mxu0 0.0
    %208 = vmatpush1.xpose.msra.mxu0 %v170
    %209 = vmatprep.subr.mxu0 0.0
    %210 = vmatpush1.xpose.msra.mxu0 %v171
    %211 = vmatprep.subr.mxu0 0.0
    %212 = vmatpush1.xpose.msra.mxu0 %v172
    %213 = vmatprep.subr.mxu0 0.0
    %214 = vmatpush1.xpose.msra.mxu0 %v173
    %215 = vmatprep.subr.mxu0 0.0
    %216 = vmatpush1.xpose.msra.mxu0 %v174
    %217 = vmatprep.subr.mxu0 0.0
    %218 = vmatpush1.xpose.msra.mxu0 %v175
    %219 = vmatprep.subr.mxu0 0.0
    %220 = vmatpush1.xpose.msra.mxu0 %v176
    %221 = vmatprep.subr.mxu0 0.0
    %222 = vmatpush1.xpose.msra.mxu0 %v177
    %223 = vmatprep.subr.mxu0 0.0
    %224 = vmatpush1.xpose.msra.mxu0 %v178
    %225 = vmatprep.subr.mxu0 0.0
    %226 = vmatpush1.xpose.msra.mxu0 %v179
    %227 = vmatprep.subr.mxu0 0.0
    %228 = vmatpush1.xpose.msra.mxu0 %v180
    %229 = vmatprep.subr.mxu0 0.0
    %230 = vmatpush1.xpose.msra.mxu0 %v181
    %231 = vmatprep.subr.mxu0 0.0
    %232 = vmatpush1.xpose.msra.mxu0 %v182
    %233 = vmatprep.subr.mxu0 0.0
    %234 = vmatpush1.xpose.msra.mxu0 %v183
    %235 = vmatprep.subr.mxu0 0.0
    %236 = vmatpush1.xpose.msra.mxu0 %v184
    %237 = vmatprep.subr.mxu0 0.0
    %238 = vmatpush1.xpose.msra.mxu0 %v185
    %239 = vmatprep.subr.mxu0 0.0
    %240 = vmatpush1.xpose.msra.mxu0 %v186
    %241 = vmatprep.subr.mxu0 0.0
    %242 = vmatpush1.xpose.msra.mxu0 %v187
    %243 = vmatprep.subr.mxu0 0.0
    %244 = vmatpush1.xpose.msra.mxu0 %v188
    %245 = vmatprep.subr.mxu0 0.0
    %246 = vmatpush1.xpose.msra.mxu0 %v189
    %247 = vmatprep.subr.mxu0 0.0
    %248 = vmatpush1.xpose.msra.mxu0 %v190
    %249 = vmatprep.subr.mxu0 0.0
    %250 = vmatpush1.xpose.msra.mxu0 %v191
    %251 = vmatprep.subr.mxu0 0.0
    %252 = vmatpush1.xpose.msra.mxu0 %v192
    %253 = vmatprep.subr.mxu0 0.0
    %254 = vmatpush1.xpose.msra.mxu0 %v193
    %255 = vmatprep.subr.mxu0 0.0
    %256 = vmatpush1.xpose.msra.mxu0 %v194
    %257 = vmatprep.subr.mxu0 0.0
    %258 = vmatpush1.xpose.msra.mxu0 %v195
    %259 = vmatprep.subr.mxu0 0.0
    %260 = vmatpush1.xpose.msra.mxu0 %v196
    %261 = vmatprep.mubr.f32.mxu0 0.0
    %262 = vmatmul.mubr.f32.gmra.mrb[0].mxu0 %v54
    %v263 = vpop.f32.mrb[0].mxu0
    %v264 = vadd.f32 0.0, %v263
    %v265 = vpop.f32.mrb[0].mxu0
    %v266 = vadd.f32 0.0, %v265
    %267 = vmatprep.mubr.f32.mxu0 0.0
    %268 = vmatmul.mubr.f32.gmra.mrb[0].mxu0 %v55
    %v269 = vpop.f32.mrb[0].mxu0
    %v270 = vadd.f32 0.0, %v269
    %v271 = vpop.f32.mrb[0].mxu0
    %v272 = vadd.f32 0.0, %v271
    %273 = vdwg.mxu0
    %v274 = vld [vmem:[%s3] sm:$0xff]
    %v275 = vld [vmem:[%s3 + $0x8] sm:$0xff]
    %v276 = vld [vmem:[%s4] sm:$0x3]
    %v277 = vld [vmem:[%s5] sm:$0x3]
    %279 = vset.pattern.permute.xlu0 0
    %280 = vperm.xlu0 %279, %v274
    %v281 = vpop.permute.xlu0 %280
    %284 = vset.pattern.permute.xlu0 0
    %285 = vperm.xlu0 %284, %v275
    %v286 = vpop.permute.xlu0 %285
    %v289 = vlaneseq
    %v290 = vshrl.u32 %v289, 7
    %v291 = vsub.s32 0, %v290
    %v292 = vrot.slane %v276, %v291
    %v293 = vlaneseq
    %v294 = vshrl.u32 %v293, 7
    %v295 = vsub.s32 1, %v294
    %v296 = vrot.slane %v276, %v295
    %v299 = vadd.f32 %v281, %v292
    %v300 = vadd.f32 %v281, %v296
    %v301 = vadd.f32 %v286, %v292
    %v302 = vadd.f32 %v286, %v296
    %v303 = vadd.f32 %v299, %v155
    %v304 = vadd.f32 %v300, %v157
    %v305 = vadd.f32 %v301, %v161
    %v306 = vadd.f32 %v302, %v163
    %v307 = vmax.f32 %v303, 0.0
    %v308 = vmax.f32 %v304, 0.0
    %v309 = vmax.f32 %v305, 0.0
    %v310 = vmax.f32 %v306, 0.0
    %v312 = vlaneseq
    %v313 = vshrl.u32 %v312, 7
    %v314 = vsub.s32 0, %v313
    %v315 = vrot.slane %v277, %v314
    %v316 = vlaneseq
    %v317 = vshrl.u32 %v316, 7
    %v318 = vsub.s32 1, %v317
    %v319 = vrot.slane %v277, %v318
    %v322 = vadd.f32 %v281, %v315
    %v323 = vadd.f32 %v281, %v319
    %v324 = vadd.f32 %v286, %v315
    %v325 = vadd.f32 %v286, %v319
    %v326 = vadd.f32 %v322, %v264
    %v327 = vadd.f32 %v323, %v266
    %v328 = vadd.f32 %v324, %v270
    %v329 = vadd.f32 %v325, %v272
    %v330 = vmax.f32 %v326, 0.0
    %v331 = vmax.f32 %v327, 0.0
    %v332 = vmax.f32 %v328, 0.0
    %v333 = vmax.f32 %v329, 0.0
    %v334 = vrsqrt.pop %v307
    %v335 = vmul.f32 %v307, %v334
    %vm336 = vcmp.eq.f32.partialorder %v307, inf
    %v337 = vsel %vm336, %v307, %v335
    %vm338 = vcmp.eq.f32.partialorder %v307, 0.0
    %v339 = vand.u32 %v307, 2147483648
    %v340 = vsel %vm338, %v339, %v337
    %v341 = vrsqrt.pop %v308
    %v342 = vmul.f32 %v308, %v341
    %vm343 = vcmp.eq.f32.partialorder %v308, inf
    %v344 = vsel %vm343, %v308, %v342
    %vm345 = vcmp.eq.f32.partialorder %v308, 0.0
    %v346 = vand.u32 %v308, 2147483648
    %v347 = vsel %vm345, %v346, %v344
    %v348 = vrsqrt.pop %v309
    %v349 = vmul.f32 %v309, %v348
    %vm350 = vcmp.eq.f32.partialorder %v309, inf
    %v351 = vsel %vm350, %v309, %v349
    %vm352 = vcmp.eq.f32.partialorder %v309, 0.0
    %v353 = vand.u32 %v309, 2147483648
    %v354 = vsel %vm352, %v353, %v351
    %v355 = vrsqrt.pop %v310
    %v356 = vmul.f32 %v310, %v355
    %vm357 = vcmp.eq.f32.partialorder %v310, inf
    %v358 = vsel %vm357, %v310, %v356
    %vm359 = vcmp.eq.f32.partialorder %v310, 0.0
    %v360 = vand.u32 %v310, 2147483648
    %v361 = vsel %vm359, %v360, %v358
    %v362 = vrsqrt.pop %v330
    %v363 = vmul.f32 %v330, %v362
    %vm364 = vcmp.eq.f32.partialorder %v330, inf
    %v365 = vsel %vm364, %v330, %v363
    %vm366 = vcmp.eq.f32.partialorder %v330, 0.0
    %v367 = vand.u32 %v330, 2147483648
    %v368 = vsel %vm366, %v367, %v365
    %v369 = vrsqrt.pop %v331
    %v370 = vmul.f32 %v331, %v369
    %vm371 = vcmp.eq.f32.partialorder %v331, inf
    %v372 = vsel %vm371, %v331, %v370
    %vm373 = vcmp.eq.f32.partialorder %v331, 0.0
    %v374 = vand.u32 %v331, 2147483648
    %v375 = vsel %vm373, %v374, %v372
    %v376 = vrsqrt.pop %v332
    %v377 = vmul.f32 %v332, %v376
    %vm378 = vcmp.eq.f32.partialorder %v332, inf
    %v379 = vsel %vm378, %v332, %v377
    %vm380 = vcmp.eq.f32.partialorder %v332, 0.0
    %v381 = vand.u32 %v332, 2147483648
    %v382 = vsel %vm380, %v381, %v379
    %v383 = vrsqrt.pop %v333
    %v384 = vmul.f32 %v333, %v383
    %vm385 = vcmp.eq.f32.partialorder %v333, inf
    %v386 = vsel %vm385, %v333, %v384
    %vm387 = vcmp.eq.f32.partialorder %v333, 0.0
    %v388 = vand.u32 %v333, 2147483648
    %v389 = vsel %vm387, %v388, %v386
    %v390 = vsub.f32 %v340, %v368
    %v391 = vsub.f32 %v347, %v375
    %v392 = vsub.f32 %v354, %v382
    %v393 = vsub.f32 %v361, %v389
    %v394 = vmul.f32 %v390, 1.442695
    %v395 = vpow.pop %v394
    %v396 = vmul.f32 %v391, 1.442695
    %v397 = vpow.pop %v396
    %v398 = vmul.f32 %v392, 1.442695
    %v399 = vpow.pop %v398
    %v400 = vmul.f32 %v393, 1.442695
    %v401 = vpow.pop %v400
    %v402 = vadd.f32 %v395, 1.0
    %v403 = vadd.f32 %v397, 1.0
    %v404 = vadd.f32 %v399, 1.0
    %v405 = vadd.f32 %v401, 1.0
    %v406 = vrcp.pop %v402
    %v407 = vrcp.pop %v403
    %v408 = vrcp.pop %v404
    %v409 = vrcp.pop %v405
    %410 = vst [vmem:[#allocation7] sm:$0xff] %v406
    %411 = vst [vmem:[#allocation7 + $0x8] sm:$0xff] %v407
    %412 = vst [vmem:[#allocation7 + $0x10] sm:$0xff] %v408
    %413 = vst [vmem:[#allocation7 + $0x18] sm:$0xff] %v409
    // Predicated region
    $region34: #{tpu_custom_call.1} parent=1 // pred_check
      _
    $region35: #{tpu_custom_call.1} parent=1 // pred_check_branch
      %415 = sbr.rel (0) target = $region37
    $region36: #{tpu_custom_call.1} parent=1 // pred_region
      %s417 = ssub.s32 512, 512
      %418 = vsyncadd [#allocation4], %s417
      %s419 = sshll.u32 [#allocation7], 4
      %s420 = int_to_ptr.vmem [resolvable:$true] %s419
      %425 = dma.vmem_to_hbm [thread:$0]  %s420, 512, %s6, [#allocation4], 256, 256, 16
    $region37: #{tpu_custom_call.1} parent=1 // pred_fallthru
      _
    // Predicated region
    $region38: #{tpu_custom_call.1} parent=1 // pred_check
      _
    $region39: #{tpu_custom_call.1} parent=1 // pred_check_branch
      %427 = sbr.rel (0) target = $region41
    $region40: #{tpu_custom_call.1} parent=1 // pred_region
      %428 = dma.done [#allocation4], 512
    $region41: #{tpu_custom_call.1} parent=1 // pred_fallthru
      _
    %429 = vsyncpa [#allocation3], 1
    %430 = vsyncpa [#allocation6], 1
    %431 = vsyncpa [#allocation4], 1

</llo_original>
